<compile_context>
chip_gen: v7x
topology: tpu7x:2x2x1
jax: 0.10.0
libtpu: 0.0.40
codegen_flags: <defaults>
</compile_context>

<pallas_src>
import functools

import jax
import jax.numpy as jnp
from jax.experimental import pallas as pl
from jax.experimental.pallas import tpu as pltpu

# TODO(synk): `safe_log` is not defined in the reference file; we use
#             log(x + 1e-7), the common implementation in this codebase family.
_SAFE_LOG_EPS = 1e-7


def _round_up(x, m):
    return ((x + m - 1) // m) * m


def _risk_set_sum_kernel(ex_ref, t_row_ref, t_col_ref, out_ref, acc_ref):
    """Accumulates S[j] = sum_i ex[i] * [t[i] >= t[j]] over i-tiles.

    ex_ref:    (1, TI)  lane-dense tile of exp(risk - max_risk)   (i-tile)
    t_row_ref: (1, TJ)  lane-dense tile of event times            (j-tile)
    t_col_ref: (TI, 1)  sublane tile of event times               (i-tile)
    out_ref:   (1, TJ)  risk-set sums for this j-tile (written at last i only)
    acc_ref:   (8, TJ)  f32 VMEM accumulator (row 0 holds the result)
    """
    i = pl.program_id(1)

    @pl.when(i == 0)
    def _init():
        acc_ref[...] = jnp.zeros_like(acc_ref)

    # Same predicate as torch: mask = 0 where t[j] - t[i] > 0, i.e. keep t[j] <= t[i].
    # Single compare + select on the VPU (no explicit diff tile).
    mask = jnp.where(t_row_ref[...] <= t_col_ref[...], 1.0, 0.0)   # (TI, TJ) f32, 0/1

    # MXU contraction; broadcast ex to 8 sublanes so the matmul is (8,128)-aligned.
    ex_tile = ex_ref[...]                                           # (1, TI)
    ex8 = jnp.broadcast_to(ex_tile, (8, ex_tile.shape[1]))          # (8, TI)
    acc_ref[...] += jnp.dot(ex8, mask, preferred_element_type=jnp.float32)

    @pl.when(i == pl.num_programs(1) - 1)
    def _finalize():
        out_ref[...] = acc_ref[0:1, :].astype(out_ref.dtype)


@functools.partial(jax.jit, static_argnames=("reduction",))
def partial_likelihood(risk_pred, y_true, reduction="mean"):
    """risk_pred: (N,) or (N,1) float; y_true: (N, 2) with columns [t, e]."""
    assert reduction in ("mean", "sum")
    risk = risk_pred.reshape(-1).astype(jnp.float32)
    n = risk.shape[0]
    t = y_true[:, 0].astype(jnp.float32).reshape(-1)
    e = y_true[:, 1].astype(jnp.float32).reshape(-1)

    # Hoisted O(N) / scalar work (cheap in XLA; keeps the kernel a pure tiled reduction).
    max_risk = jnp.max(risk)
    ex = jnp.exp(risk - max_risk)

    # --- Tile selection (VMEM bounded on v5e / v6e / v7x). ---
    n_pad128 = _round_up(n, 128)
    if n_pad128 <= 1024:
        n_pad = n_pad128
        ti = tj = n_pad                   # single tile, at most (1024, 1024) f32 = 4 MiB
    else:
        ti, tj = 512, 1024                # (TI, TJ) mask tile = 2 MiB f32
        n_pad = _round_up(n, 1024)        # divisible by both ti and tj

    pad = n_pad - n
    # Padded ex rows are 0 -> no contribution to any column; padded j columns dropped below.
    ex_row = jnp.pad(ex, (0, pad)).reshape(1, n_pad)
    t_pad = jnp.pad(t, (0, pad))
    t_row = t_pad.reshape(1, n_pad)
    t_col = t_pad.reshape(n_pad, 1)

    grid = (n_pad // tj, n_pad // ti)     # (j parallel, i = reduction, innermost)

    riskset = pl.pallas_call(
        _risk_set_sum_kernel,
        out_shape=jax.ShapeDtypeStruct((1, n_pad), jnp.float32),
        grid=grid,
        in_specs=[
            pl.BlockSpec((1, ti), lambda j, i: (0, i)),   # ex   (lane-dense, i-tile)
            pl.BlockSpec((1, tj), lambda j, i: (0, j)),   # t    (lane-dense, j-tile)
            pl.BlockSpec((ti, 1), lambda j, i: (i, 0)),   # t    (sublane i-tile for mask)
        ],
        out_specs=pl.BlockSpec((1, tj), lambda j, i: (0, j)),
        scratch_shapes=[pltpu.VMEM((8, tj), jnp.float32)],
        compiler_params=pltpu.CompilerParams(
            dimension_semantics=("parallel", "arbitrary"),
            vmem_limit_bytes=32 * 1024 * 1024),
    )(ex_row, t_row, t_col)

    riskset = riskset[0, :n]                                  # drop padded j columns
    log_loss = jnp.log(riskset + _SAFE_LOG_EPS) + max_risk    # safe_log + max shift
    # NOTE: matches PyTorch exactly -- NaN/Inf if y_true has zero events (sum(e) == 0).
    nll = -jnp.sum((risk - log_loss) * e) / jnp.sum(e)
    if reduction == "mean":
        nll = nll / n
    return nll


def partial_likelihood_ref(risk_pred, y_true, reduction="mean"):
    """Pure-JAX transcription of the PyTorch forward (for verification)."""
    risk = risk_pred.reshape(-1, 1).astype(jnp.float32)
    t = y_true[:, 0].reshape(-1, 1).astype(jnp.float32)
    e = y_true[:, 1].reshape(-1, 1).astype(jnp.float32)
    mask = jnp.where(t.T - t > 0.0, 0.0, 1.0)
    max_risk = jnp.max(risk)
    ll = jnp.sum(jnp.exp(risk - max_risk) * mask, axis=0)
    ll = jnp.log(ll + _SAFE_LOG_EPS).reshape(-1, 1) + max_risk
    nll = -jnp.sum((risk - ll) * e) / jnp.sum(e)
    if reduction == "mean":
        nll = nll / risk.shape[0]
    return nll


if __name__ == "__main__":
    base = jax.random.PRNGKey(0)
    # 8: single 128-wide tile; 300: single 384; 700: single 768;
    # 1500: multi-tile path, grid = (2, 4) with (TI, TJ) = (512, 1024).
    for n in (8, 300, 700, 1500):
        k1, k2, k3 = jax.random.split(jax.random.fold_in(base, n), 3)
        risk_pred = jax.random.normal(k1, (n,), dtype=jnp.float32)
        t_true = jax.random.uniform(k2, (n,), dtype=jnp.float32, minval=0.1, maxval=5.0)
        e_true = (jax.random.uniform(k3, (n,), dtype=jnp.float32) > 0.3).astype(jnp.float32)
        e_true = e_true.at[0].set(1.0)        # ensure at least one event so sum(e) > 0
        y_true = jnp.stack([t_true, e_true], axis=1)  # (n, 2)

        for reduction in ("mean", "sum"):
            out = partial_likelihood(risk_pred, y_true, reduction=reduction)
            out = jax.block_until_ready(out)
            ref = partial_likelihood_ref(risk_pred, y_true, reduction=reduction)
            assert jnp.allclose(out, ref, rtol=1e-3, atol=1e-3), (n, reduction, out, ref)

    print("KERNEL_OK")
</pallas_src>

<mosaic_0001>
module attributes {stable_mosaic.version = 11 : i64} {
  func.func @_risk_set_sum_kernel(%arg0: i32, %arg1: i32, %arg2: memref<1x128xf32, #tpu.memory_space<vmem>>, %arg3: memref<1x128xf32, #tpu.memory_space<vmem>>, %arg4: memref<128x1xf32, #tpu.memory_space<vmem>>, %arg5: memref<1x128xf32, #tpu.memory_space<vmem>>, %arg6: memref<8x128xf32, #tpu.memory_space<vmem>>) attributes {dimension_semantics = [#tpu.dimension_semantics<parallel>, #tpu.dimension_semantics<arbitrary>], iteration_bounds = array<i64: 1, 1>, scalar_prefetch = 0 : i64, scratch_operands = 1 : i64, tpu.core_type = #tpu.core_type<tc>, window_params = [{transform_indices = @transform_0, window_bounds = array<i64: 1, 128>}, {transform_indices = @transform_1, window_bounds = array<i64: 1, 128>}, {transform_indices = @transform_2, window_bounds = array<i64: 128, 1>}, {transform_indices = @transform_3, window_bounds = array<i64: 1, 128>}]} {
    %c0_i32 = arith.constant 0 : i32
    %0 = arith.cmpi eq, %arg1, %c0_i32 : i32
    %1 = arith.extui %0 : i1 to i32
    %c0_i32_0 = arith.constant 0 : i32
    %2 = arith.cmpi ne, %1, %c0_i32_0 : i32
    scf.if %2 {
      %cst_14 = arith.constant 0.000000e+00 : f32
      %21 = vector.broadcast %cst_14 : f32 to vector<8x128xf32>
      %c0_15 = arith.constant 0 : index
      %c0_16 = arith.constant 0 : index
      %22 = vector.load %arg6[%c0_15, %c0_16] : memref<8x128xf32, #tpu.memory_space<vmem>>, vector<8x128xf32>
      tpu.vector_store %arg6[%c0_15, %c0_16], %21 {strides = array<i32>} : memref<8x128xf32, #tpu.memory_space<vmem>>, vector<8x128xf32>,
    } else {
    }
    %c0 = arith.constant 0 : index
    %c0_1 = arith.constant 0 : index
    %3 = vector.load %arg3[%c0, %c0_1] : memref<1x128xf32, #tpu.memory_space<vmem>>, vector<1x128xf32>
    %c0_2 = arith.constant 0 : index
    %c0_3 = arith.constant 0 : index
    %4 = vector.load %arg4[%c0_2, %c0_3] : memref<128x1xf32, #tpu.memory_space<vmem>>, vector<128x1xf32>
    %5 = vector.broadcast %3 : vector<1x128xf32> to vector<128x128xf32>
    %6 = vector.broadcast %4 : vector<128x1xf32> to vector<128x128xf32>
    %7 = arith.cmpf ole, %5, %6 : vector<128x128xf32>
    %cst = arith.constant 1.000000e+00 : f32
    %cst_4 = arith.constant 0.000000e+00 : f32
    %8 = vector.broadcast %cst : f32 to vector<128x128xf32>
    %9 = vector.broadcast %cst_4 : f32 to vector<128x128xf32>
    %10 = arith.select %7, %8, %9 : vector<128x128xi1>, vector<128x128xf32>
    %c0_5 = arith.constant 0 : index
    %c0_6 = arith.constant 0 : index
    %11 = vector.load %arg2[%c0_5, %c0_6] : memref<1x128xf32, #tpu.memory_space<vmem>>, vector<1x128xf32>
    %12 = vector.shape_cast %11 : vector<1x128xf32> to vector<1x128xf32>
    %13 = vector.broadcast %12 : vector<1x128xf32> to vector<8x128xf32>
    %c0_7 = arith.constant 0 : index
    %c0_8 = arith.constant 0 : index
    %14 = vector.load %arg6[%c0_7, %c0_8] : memref<8x128xf32, #tpu.memory_space<vmem>>, vector<8x128xf32>
    %cst_9 = arith.constant dense<0.000000e+00> : vector<8x128xf32>
    %15 = tpu.matmul %13, %10, %cst_9 {dimension_numbers = #tpu.dot_dimension_numbers<[1], [0], [0], [1], [0, 0, 1, 1], [], []>} : vector<8x128xf32>, vector<128x128xf32>, vector<8x128xf32> -> vector<8x128xf32>
    %16 = arith.addf %14, %15 : vector<8x128xf32>
    %c0_10 = arith.constant 0 : index
    %c0_11 = arith.constant 0 : index
    %17 = vector.load %arg6[%c0_10, %c0_11] : memref<8x128xf32, #tpu.memory_space<vmem>>, vector<8x128xf32>
    tpu.vector_store %arg6[%c0_10, %c0_11], %16 {strides = array<i32>} : memref<8x128xf32, #tpu.memory_space<vmem>>, vector<8x128xf32>,
    %c0_i32_12 = arith.constant 0 : i32
    %18 = arith.cmpi eq, %arg1, %c0_i32_12 : i32
    %19 = arith.extui %18 : i1 to i32
    %c0_i32_13 = arith.constant 0 : i32
    %20 = arith.cmpi ne, %19, %c0_i32_13 : i32
    scf.if %20 {
      %c0_14 = arith.constant 0 : index
      %c0_15 = arith.constant 0 : index
      %21 = vector.load %arg6[%c0_14, %c0_15] : memref<8x128xf32, #tpu.memory_space<vmem>>, vector<1x128xf32>
      %c0_16 = arith.constant 0 : index
      %c0_17 = arith.constant 0 : index
      %22 = vector.load %arg5[%c0_16, %c0_17] : memref<1x128xf32, #tpu.memory_space<vmem>>, vector<1x128xf32>
      tpu.vector_store %arg5[%c0_16, %c0_17], %21 {strides = array<i32>} : memref<1x128xf32, #tpu.memory_space<vmem>>, vector<1x128xf32>,
    } else {
    }
    return
  }
  func.func @transform_0(%arg0: i32, %arg1: i32) -> (i32, i32) {
    %c0_i32 = arith.constant 0 : i32
    %c0_i32_0 = arith.constant 0 : i32
    return %c0_i32, %arg1 : i32, i32
  }
  func.func @transform_1(%arg0: i32, %arg1: i32) -> (i32, i32) {
    %c0_i32 = arith.constant 0 : i32
    %c0_i32_0 = arith.constant 0 : i32
    return %c0_i32, %arg0 : i32, i32
  }
  func.func @transform_2(%arg0: i32, %arg1: i32) -> (i32, i32) {
    %c0_i32 = arith.constant 0 : i32
    %c0_i32_0 = arith.constant 0 : i32
    return %arg1, %c0_i32 : i32, i32
  }
  func.func @transform_3(%arg0: i32, %arg1: i32) -> (i32, i32) {
    %c0_i32 = arith.constant 0 : i32
    %c0_i32_0 = arith.constant 0 : i32
    return %c0_i32, %arg0 : i32, i32
  }
}

</mosaic_0001>

<llo_original>
// kernel: partial_likelihood.1
$region0: #{partial_likelihood.1}
  #allocation0 [shape = 'u32[]', space=smem, size = 0x4, offset = 0x4, fixed_abs, tag = 'smem constant byte address 0x4 - core index']
  #allocation1 [shape = 'u32[144,128]{1,0:T(1,128)}', space=vmem, size = 0x12000, scoped, tag = 'internal scratch']
  #allocation2 [shape = 'f32[8,128]{1,0:T(8,128)}', space=vmem, size = 0x1000, scoped, tag = 'scratch operand']
  %s0 = inlined_call_operand.vmem [shape: f32[1,128], index: 0, kind: input, shape index: {}]
  %s1 = inlined_call_operand.vmem [shape: f32[1,128], index: 1, kind: input, shape index: {}]
  %s2 = inlined_call_operand.vmem [shape: f32[128,1], index: 2, kind: input, shape index: {}]
  %s3 = inlined_call_operand.vmem [shape: f32[1,128], index: 3, kind: output, shape index: {}]
  %s4 = sld [smem:[#allocation0]]
  $region30: #{partial_likelihood.1} parent=0
    _
  %s6 = ssub.s32 1, %s4
  %s7 = scalar_select 0, %s6, %s4
  // Predicated region
  $region2: #{partial_likelihood.1} parent=0 // pred_check
    _
  $region3: #{partial_likelihood.1} parent=0 // pred_check_branch
    %9 = sbr.rel (0) target = $region5
  $region4: #{partial_likelihood.1} parent=0 // pred_region
    _
  $region5: #{partial_likelihood.1} parent=0 // pred_fallthru
    _
  // Predicated region
  $region6: #{partial_likelihood.1} parent=0 // pred_check
    _
  $region7: #{partial_likelihood.1} parent=0 // pred_check_branch
    %11 = sbr.rel (0) target = $region9
  $region8: #{partial_likelihood.1} parent=0 // pred_region
    _
  $region9: #{partial_likelihood.1} parent=0 // pred_fallthru
    _
  // Predicated region
  $region10: #{partial_likelihood.1} parent=0 // pred_check
    _
  $region11: #{partial_likelihood.1} parent=0 // pred_check_branch
    %13 = sbr.rel (0) target = $region13
  $region12: #{partial_likelihood.1} parent=0 // pred_region
    _
  $region13: #{partial_likelihood.1} parent=0 // pred_fallthru
    _
  %p14 = scmp.eq.s32.totalorder 0, 0
  // Predicated region
  $region14: #{partial_likelihood.1} parent=0 // pred_check
    %p15 = pneg %p14
  $region15: #{partial_likelihood.1} parent=0 // pred_check_branch
    %17 = sbr.rel (%p15) target = $region17
  $region16: #{partial_likelihood.1} parent=0 // pred_region
    %18 = vst [vmem:[#allocation2] sm:$0xff] 0.0
  $region17: #{partial_likelihood.1} parent=0 // pred_fallthru
    _
  %v19 = vld [vmem:[%s1] sm:$0x1]
  %v20 = vld [vmem:[%s2] sm:$0xff]
  %v21 = vld [vmem:[%s2 + $0x8] sm:$0xff]
  %v22 = vld [vmem:[%s2 + $0x10] sm:$0xff]
  %v23 = vld [vmem:[%s2 + $0x18] sm:$0xff]
  %v24 = vld [vmem:[%s2 + $0x20] sm:$0xff]
  %v25 = vld [vmem:[%s2 + $0x28] sm:$0xff]
  %v26 = vld [vmem:[%s2 + $0x30] sm:$0xff]
  %v27 = vld [vmem:[%s2 + $0x38] sm:$0xff]
  %v28 = vld [vmem:[%s2 + $0x40] sm:$0xff]
  %v29 = vld [vmem:[%s2 + $0x48] sm:$0xff]
  %v30 = vld [vmem:[%s2 + $0x50] sm:$0xff]
  %v31 = vld [vmem:[%s2 + $0x58] sm:$0xff]
  %v32 = vld [vmem:[%s2 + $0x60] sm:$0xff]
  %v33 = vld [vmem:[%s2 + $0x68] sm:$0xff]
  %v34 = vld [vmem:[%s2 + $0x70] sm:$0xff]
  %v35 = vld [vmem:[%s2 + $0x78] sm:$0xff]
  %v37 = vlaneseq
  %v38 = vshrl.u32 %v37, 7
  %v39 = vsub.s32 0, %v38
  %v40 = vrot.slane %v19, %v39
  %43 = vset.pattern.permute.xlu0 0
  %44 = vperm.xlu0 %43, %v20
  %v45 = vpop.permute.xlu0 %44
  %48 = vset.pattern.permute.xlu0 0
  %49 = vperm.xlu0 %48, %v21
  %v50 = vpop.permute.xlu0 %49
  %53 = vset.pattern.permute.xlu0 0
  %54 = vperm.xlu0 %53, %v22
  %v55 = vpop.permute.xlu0 %54
  %58 = vset.pattern.permute.xlu0 0
  %59 = vperm.xlu0 %58, %v23
  %v60 = vpop.permute.xlu0 %59
  %63 = vset.pattern.permute.xlu0 0
  %64 = vperm.xlu0 %63, %v24
  %v65 = vpop.permute.xlu0 %64
  %68 = vset.pattern.permute.xlu0 0
  %69 = vperm.xlu0 %68, %v25
  %v70 = vpop.permute.xlu0 %69
  %73 = vset.pattern.permute.xlu0 0
  %74 = vperm.xlu0 %73, %v26
  %v75 = vpop.permute.xlu0 %74
  %78 = vset.pattern.permute.xlu0 0
  %79 = vperm.xlu0 %78, %v27
  %v80 = vpop.permute.xlu0 %79
  %83 = vset.pattern.permute.xlu0 0
  %84 = vperm.xlu0 %83, %v28
  %v85 = vpop.permute.xlu0 %84
  %88 = vset.pattern.permute.xlu0 0
  %89 = vperm.xlu0 %88, %v29
  %v90 = vpop.permute.xlu0 %89
  %93 = vset.pattern.permute.xlu0 0
  %94 = vperm.xlu0 %93, %v30
  %v95 = vpop.permute.xlu0 %94
  %98 = vset.pattern.permute.xlu0 0
  %99 = vperm.xlu0 %98, %v31
  %v100 = vpop.permute.xlu0 %99
  %103 = vset.pattern.permute.xlu0 0
  %104 = vperm.xlu0 %103, %v32
  %v105 = vpop.permute.xlu0 %104
  %108 = vset.pattern.permute.xlu0 0
  %109 = vperm.xlu0 %108, %v33
  %v110 = vpop.permute.xlu0 %109
  %113 = vset.pattern.permute.xlu0 0
  %114 = vperm.xlu0 %113, %v34
  %v115 = vpop.permute.xlu0 %114
  %118 = vset.pattern.permute.xlu0 0
  %119 = vperm.xlu0 %118, %v35
  %v120 = vpop.permute.xlu0 %119
  %vm122 = vcmp.le.f32.partialorder %v40, %v45
  %vm123 = vcmp.le.f32.partialorder %v40, %v50
  %vm124 = vcmp.le.f32.partialorder %v40, %v55
  %vm125 = vcmp.le.f32.partialorder %v40, %v60
  %vm126 = vcmp.le.f32.partialorder %v40, %v65
  %vm127 = vcmp.le.f32.partialorder %v40, %v70
  %vm128 = vcmp.le.f32.partialorder %v40, %v75
  %vm129 = vcmp.le.f32.partialorder %v40, %v80
  %vm130 = vcmp.le.f32.partialorder %v40, %v85
  %vm131 = vcmp.le.f32.partialorder %v40, %v90
  %vm132 = vcmp.le.f32.partialorder %v40, %v95
  %vm133 = vcmp.le.f32.partialorder %v40, %v100
  %vm134 = vcmp.le.f32.partialorder %v40, %v105
  %vm135 = vcmp.le.f32.partialorder %v40, %v110
  %vm136 = vcmp.le.f32.partialorder %v40, %v115
  %vm137 = vcmp.le.f32.partialorder %v40, %v120
  %v138 = vsel %vm122, 1.0, 0.0
  %v139 = vsel %vm123, 1.0, 0.0
  %v140 = vsel %vm124, 1.0, 0.0
  %v141 = vsel %vm125, 1.0, 0.0
  %v142 = vsel %vm126, 1.0, 0.0
  %v143 = vsel %vm127, 1.0, 0.0
  %v144 = vsel %vm128, 1.0, 0.0
  %v145 = vsel %vm129, 1.0, 0.0
  %v146 = vsel %vm130, 1.0, 0.0
  %v147 = vsel %vm131, 1.0, 0.0
  %v148 = vsel %vm132, 1.0, 0.0
  %v149 = vsel %vm133, 1.0, 0.0
  %v150 = vsel %vm134, 1.0, 0.0
  %v151 = vsel %vm135, 1.0, 0.0
  %v152 = vsel %vm136, 1.0, 0.0
  %v153 = vsel %vm137, 1.0, 0.0
  %v154 = vld [vmem:[%s0] sm:$0x1]
  %v156 = vlaneseq
  %v157 = vshrl.u32 %v156, 7
  %v158 = vsub.s32 0, %v157
  %v159 = vrot.slane %v154, %v158
  %v161 = vld [vmem:[#allocation2] sm:$0xff]
  %162 = vmatprep.subr.mxu0 0.0
  %163 = vmatpush1.msra.mxu0 %v138
  %164 = vmatprep.subr.mxu0 0.0
  %165 = vmatpush1.msra.mxu0 %v139
  %166 = vmatprep.subr.mxu0 0.0
  %167 = vmatpush1.msra.mxu0 %v140
  %168 = vmatprep.subr.mxu0 0.0
  %169 = vmatpush1.msra.mxu0 %v141
  %170 = vmatprep.subr.mxu0 0.0
  %171 = vmatpush1.msra.mxu0 %v142
  %172 = vmatprep.subr.mxu0 0.0
  %173 = vmatpush1.msra.mxu0 %v143
  %174 = vmatprep.subr.mxu0 0.0
  %175 = vmatpush1.msra.mxu0 %v144
  %176 = vmatprep.subr.mxu0 0.0
  %177 = vmatpush1.msra.mxu0 %v145
  %178 = vmatprep.subr.mxu0 0.0
  %179 = vmatpush1.msra.mxu0 %v146
  %180 = vmatprep.subr.mxu0 0.0
  %181 = vmatpush1.msra.mxu0 %v147
  %182 = vmatprep.subr.mxu0 0.0
  %183 = vmatpush1.msra.mxu0 %v148
  %184 = vmatprep.subr.mxu0 0.0
  %185 = vmatpush1.msra.mxu0 %v149
  %186 = vmatprep.subr.mxu0 0.0
  %187 = vmatpush1.msra.mxu0 %v150
  %188 = vmatprep.subr.mxu0 0.0
  %189 = vmatpush1.msra.mxu0 %v151
  %190 = vmatprep.subr.mxu0 0.0
  %191 = vmatpush1.msra.mxu0 %v152
  %192 = vmatprep.subr.mxu0 0.0
  %193 = vmatpush1.msra.mxu0 %v153
  %194 = vmatprep.subr.mxu0 0.0
  %195 = vmatpush1.msra.mxu0 0.0
  %196 = vmatprep.subr.mxu0 0.0
  %197 = vmatpush1.msra.mxu0 0.0
  %198 = vmatprep.subr.mxu0 0.0
  %199 = vmatpush1.msra.mxu0 0.0
  %200 = vmatprep.subr.mxu0 0.0
  %201 = vmatpush1.msra.mxu0 0.0
  %202 = vmatprep.subr.mxu0 0.0
  %203 = vmatpush1.msra.mxu0 0.0
  %204 = vmatprep.subr.mxu0 0.0
  %205 = vmatpush1.msra.mxu0 0.0
  %206 = vmatprep.subr.mxu0 0.0
  %207 = vmatpush1.msra.mxu0 0.0
  %208 = vmatprep.subr.mxu0 0.0
  %209 = vmatpush1.msra.mxu0 0.0
  %210 = vmatprep.subr.mxu0 0.0
  %211 = vmatpush1.msra.mxu0 0.0
  %212 = vmatprep.subr.mxu0 0.0
  %213 = vmatpush1.msra.mxu0 0.0
  %214 = vmatprep.subr.mxu0 0.0
  %215 = vmatpush1.msra.mxu0 0.0
  %216 = vmatprep.subr.mxu0 0.0
  %217 = vmatpush1.msra.mxu0 0.0
  %218 = vmatprep.subr.mxu0 0.0
  %219 = vmatpush1.msra.mxu0 0.0
  %220 = vmatprep.subr.mxu0 0.0
  %221 = vmatpush1.msra.mxu0 0.0
  %222 = vmatprep.subr.mxu0 0.0
  %223 = vmatpush1.msra.mxu0 0.0
  %224 = vmatprep.subr.mxu0 0.0
  %225 = vmatpush1.msra.mxu0 0.0
  %226 = vmatprep.mubr.f32.mxu0 0.0
  %227 = vmatmul.mubr.f32.gmra.mrb[0].mxu0 %v159
  %v228 = vpop.f32.mrb[0].mxu0
  %v229 = vadd.f32 0.0, %v228
  %v230 = vpop.f32.mrb[0].mxu0
  %231 = vdwg.mxu0
  %v232 = vadd.f32 %v161, %v229
  %233 = vst [vmem:[#allocation2] sm:$0xff] %v232
  // Predicated region
  $region18: #{partial_likelihood.1} parent=0 // pred_check
    %p234 = pneg %p14
  $region19: #{partial_likelihood.1} parent=0 // pred_check_branch
    %236 = sbr.rel (%p234) target = $region21
  $region20: #{partial_likelihood.1} parent=0 // pred_region
    %v237 = vld [vmem:[#allocation2] sm:$0x1]
    %238 = vst [vmem:[%s3] sm:$0x1] %v237
  $region21: #{partial_likelihood.1} parent=0 // pred_fallthru
    _
  // Predicated region
  $region22: #{partial_likelihood.1} parent=0 // pred_check
    _
  $region23: #{partial_likelihood.1} parent=0 // pred_check_branch
    %240 = sbr.rel (0) target = $region25
  $region24: #{partial_likelihood.1} parent=0 // pred_region
    _
  $region25: #{partial_likelihood.1} parent=0 // pred_fallthru
    _
  // Predicated region
  $region26: #{partial_likelihood.1} parent=0 // pred_check
    _
  $region27: #{partial_likelihood.1} parent=0 // pred_check_branch
    %242 = sbr.rel (0) target = $region29
  $region28: #{partial_likelihood.1} parent=0 // pred_region
    _
  $region29: #{partial_likelihood.1} parent=0 // pred_fallthru
    _

</llo_original>
